<compile_context>
chip_gen: v7x
topology: tpu7x:2x2x1
jax: 0.10.0
libtpu: 0.0.40
codegen_flags: <defaults>
</compile_context>

<pallas_src>
import jax
import jax.numpy as jnp
from jax.experimental import pallas as pl
from jax.experimental.pallas import tpu as pltpu


def _cdiv(a, b):
    return (a + b - 1) // b


def _round_up(x, m):
    return ((x + m - 1) // m) * m


def mlp_kernel(x_ref, w_ref, b_ref, o_ref, acc_ref):
    """One (i, j, k) grid step.

    x_ref: (tm, tk) bf16; w_ref: (tk, tn) bf16 (pre-transposed weight);
    b_ref: (1, tn) f32; o_ref: (tm, tn) f32; acc_ref: (tm, tn) f32 scratch.
    """
    k = pl.program_id(2)

    @pl.when(k == 0)
    def _():
        acc_ref[...] = jnp.zeros_like(acc_ref)

    # bf16 x bf16 -> f32 accumulate on the MXU.
    acc_ref[...] += jnp.dot(x_ref[...], w_ref[...],
                            preferred_element_type=jnp.float32)

    @pl.when(k == pl.num_programs(2) - 1)
    def _():
        y = acc_ref[...] + b_ref[...]
        # sigmoid: exp rides the EUP slot (separate from VPU/MXU issue slots).
        o_ref[...] = jax.nn.sigmoid(y).astype(o_ref.dtype)


def _chip_config():
    """Per-generation tile / VMEM defaults. Conservative fallback is v7x-safe."""
    kind = ""
    try:
        kind = jax.devices()[0].device_kind.lower()
    except Exception:
        pass
    if "v6" in kind:
        # v6e: 128 MiB physical VMEM -> grow tiles aggressively.
        return dict(tm=1024, tn=1024, tk=1024, vmem=96 * 1024 * 1024, two_tc=False)
    if "v5 lite" in kind or "v5e" in kind or "v5lite" in kind:
        # v5e: 128 MiB VMEM but memory-wall earliest; keep tk >= 512.
        # TODO(synk): add pipeline_mode=pl.Buffered(3) on the weight BlockSpec if
        # profiles show exposed DMA at small batch on v5e.
        return dict(tm=512, tn=512, tk=1024, vmem=96 * 1024 * 1024, two_tc=False)
    two_tc = ("v7" in kind) or ("7x" in kind)
    # v7x (64 MiB per-TC VMEM) and unknown chips: safe everywhere.
    return dict(tm=512, tn=512, tk=1024, vmem=48 * 1024 * 1024, two_tc=two_tc)


def make_mlp_forward(weight, bias, *, compute_dtype=jnp.bfloat16,
                     tm=None, tn=None, tk=None):
    """Build a forward(x) closure for y = sigmoid(x @ W.T + b).

    Hoists the weight transpose / pad / cast and bias pad OFF the hot path —
    they happen exactly once here, not per call.
    weight: [n_out, n_in] (PyTorch layout); bias: [n_out].
    """
    n_out, n_in = weight.shape
    cfg = _chip_config()
    target_tm = tm or cfg["tm"]
    tn = min(tn or cfg["tn"], _round_up(n_out, 128))
    tk = min(tk or cfg["tk"], _round_up(n_in, 128))
    vmem_bytes = cfg["vmem"]

    Np = _round_up(n_out, tn)
    Kp = _round_up(n_in, tk)

    # ---- one-time parameter prep (cached in the closure) -------------------
    w_t = weight.T.astype(compute_dtype)                       # [n_in, n_out]
    if Kp != n_in or Np != n_out:
        w_t = jnp.pad(w_t, ((0, Kp - n_in), (0, Np - n_out)))  # [Kp, Np]
    b_f32 = bias.astype(jnp.float32)
    if Np != n_out:
        b_f32 = jnp.pad(b_f32, (0, Np - n_out))
    b_p = b_f32.reshape(1, Np)

    def forward(x):
        B, n_in_x = x.shape
        assert n_in_x == n_in

        # Pick tm to minimise M padding; multiple of 16 for bf16 sublane packing.
        n_blocks_m = max(1, _cdiv(B, target_tm))
        tm_ = min(_round_up(_cdiv(B, n_blocks_m), 16), _round_up(B, 16))
        Mp = _round_up(B, tm_)

        # v7x: make sure both TensorCores get work if the parallel extent is 1.
        tn_ = tn
        if cfg["two_tc"] and (Mp // tm_) * (Np // tn_) < 2 and Np >= 256:
            cand = (tn_ // 2) // 128 * 128
            while cand >= 128:
                if Np % cand == 0:
                    tn_ = cand
                    break
                cand -= 128

        x_c = x.astype(compute_dtype)
        if Mp != B or Kp != n_in:
            x_c = jnp.pad(x_c, ((0, Mp - B), (0, Kp - n_in)))

        grid = (Mp // tm_, Np // tn_, Kp // tk)
        gm, gn, _ = grid
        csize = jnp.dtype(compute_dtype).itemsize
        cost = pl.CostEstimate(
            flops=2 * Mp * Kp * Np,
            transcendentals=Mp * Np,
            bytes_accessed=(Mp * Kp * csize * gn      # x streamed once per N tile
                            + Kp * Np * csize * gm    # W streamed once per M tile
                            + Np * 4 * gm             # bias
                            + Mp * Np * 4),           # output
        )

        out_p = pl.pallas_call(
            mlp_kernel,
            out_shape=jax.ShapeDtypeStruct((Mp, Np), jnp.float32),
            grid_spec=pltpu.PrefetchScalarGridSpec(
                num_scalar_prefetch=0,
                grid=grid,
                in_specs=[
                    pl.BlockSpec((tm_, tk), lambda i, j, k: (i, k)),  # x tile
                    pl.BlockSpec((tk, tn_), lambda i, j, k: (k, j)),  # W^T tile
                    pl.BlockSpec((1, tn_), lambda i, j, k: (0, j)),   # bias tile
                ],
                out_specs=pl.BlockSpec((tm_, tn_), lambda i, j, k: (i, j)),
                scratch_shapes=[pltpu.VMEM((tm_, tn_), jnp.float32)],
            ),
            compiler_params=pltpu.CompilerParams(
                dimension_semantics=("parallel", "parallel", "arbitrary"),
                vmem_limit_bytes=vmem_bytes,
            ),
            cost_estimate=cost,
        )(x_c, w_t, b_p)

        # Slice off padding only when there is any.
        if Mp != B or Np != n_out:
            out_p = out_p[:B, :n_out]
        return out_p

    return forward


if __name__ == "__main__":
    # Small shapes consistent with the module: batch=8, n_in=32, n_out=16.
    B, n_in, n_out = 8, 32, 16

    key = jax.random.PRNGKey(0)
    kx, kw, kb = jax.random.split(key, 3)

    # Parameter init mirroring nn.Linear's uniform(-1/sqrt(n_in), 1/sqrt(n_in)).
    bound = 1.0 / (n_in ** 0.5)
    weight = jax.random.uniform(kw, (n_out, n_in), jnp.float32, -bound, bound)
    bias = jax.random.uniform(kb, (n_out,), jnp.float32, -bound, bound)
    x = jax.random.normal(kx, (B, n_in), jnp.float32)

    forward = make_mlp_forward(weight, bias)   # params padded/transposed/cast once
    out = jax.block_until_ready(jax.jit(forward)(x))

    # Reference 1: same bf16-rounded operands, f32 accumulation (matches kernel math).
    xb = x.astype(jnp.bfloat16).astype(jnp.float32)
    wb = weight.astype(jnp.bfloat16).astype(jnp.float32)
    ref_bf16 = jax.nn.sigmoid(xb @ wb.T + bias)
    # Reference 2: full-f32 math, bf16-level tolerance.
    ref_f32 = jax.nn.sigmoid(x @ weight.T + bias)

    assert out.shape == (B, n_out)
    assert jnp.allclose(out, ref_bf16, atol=1e-4, rtol=1e-4)
    assert jnp.allclose(out, ref_f32, atol=2e-2, rtol=2e-2)

    print("KERNEL_OK")
</pallas_src>

<mosaic_0001>
module attributes {stable_mosaic.version = 11 : i64} {
  func.func @mlp_kernel(%arg0: i32, %arg1: i32, %arg2: i32, %arg3: memref<16x128xbf16, #tpu.memory_space<vmem>>, %arg4: memref<128x128xbf16, #tpu.memory_space<vmem>>, %arg5: memref<1x128xf32, #tpu.memory_space<vmem>>, %arg6: memref<16x128xf32, #tpu.memory_space<vmem>>, %arg7: memref<16x128xf32, #tpu.memory_space<vmem>>) attributes {dimension_semantics = [#tpu.dimension_semantics<parallel>, #tpu.dimension_semantics<parallel>, #tpu.dimension_semantics<arbitrary>], iteration_bounds = array<i64: 1, 1, 1>, scalar_prefetch = 0 : i64, scratch_operands = 1 : i64, tpu.core_type = #tpu.core_type<tc>, window_params = [{transform_indices = @transform_0, window_bounds = array<i64: 16, 128>}, {transform_indices = @transform_1, window_bounds = array<i64: 128, 128>}, {transform_indices = @transform_2, window_bounds = array<i64: 1, 128>}, {transform_indices = @transform_3, window_bounds = array<i64: 16, 128>}]} {
    %c0_i32 = arith.constant 0 : i32
    %0 = arith.cmpi eq, %arg2, %c0_i32 : i32
    %1 = arith.extui %0 : i1 to i32
    %c0_i32_0 = arith.constant 0 : i32
    %2 = arith.cmpi ne, %1, %c0_i32_0 : i32
    scf.if %2 {
      %cst_10 = arith.constant 0.000000e+00 : f32
      %12 = vector.broadcast %cst_10 : f32 to vector<16x128xf32>
      %c0_11 = arith.constant 0 : index
      %c0_12 = arith.constant 0 : index
      %13 = vector.load %arg7[%c0_11, %c0_12] : memref<16x128xf32, #tpu.memory_space<vmem>>, vector<16x128xf32>
      tpu.vector_store %arg7[%c0_11, %c0_12], %12 {strides = array<i32>} : memref<16x128xf32, #tpu.memory_space<vmem>>, vector<16x128xf32>,
    } else {
    }
    %c0 = arith.constant 0 : index
    %c0_1 = arith.constant 0 : index
    %3 = vector.load %arg7[%c0, %c0_1] : memref<16x128xf32, #tpu.memory_space<vmem>>, vector<16x128xf32>
    %c0_2 = arith.constant 0 : index
    %c0_3 = arith.constant 0 : index
    %4 = vector.load %arg3[%c0_2, %c0_3] : memref<16x128xbf16, #tpu.memory_space<vmem>>, vector<16x128xbf16>
    %c0_4 = arith.constant 0 : index
    %c0_5 = arith.constant 0 : index
    %5 = vector.load %arg4[%c0_4, %c0_5] : memref<128x128xbf16, #tpu.memory_space<vmem>>, vector<128x128xbf16>
    %cst = arith.constant dense<0.000000e+00> : vector<16x128xf32>
    %6 = tpu.matmul %4, %5, %cst {dimension_numbers = #tpu.dot_dimension_numbers<[1], [0], [0], [1], [0, 0, 1, 1], [], []>} : vector<16x128xbf16>, vector<128x128xbf16>, vector<16x128xf32> -> vector<16x128xf32>
    %7 = arith.addf %3, %6 : vector<16x128xf32>
    %c0_6 = arith.constant 0 : index
    %c0_7 = arith.constant 0 : index
    %8 = vector.load %arg7[%c0_6, %c0_7] : memref<16x128xf32, #tpu.memory_space<vmem>>, vector<16x128xf32>
    tpu.vector_store %arg7[%c0_6, %c0_7], %7 {strides = array<i32>} : memref<16x128xf32, #tpu.memory_space<vmem>>, vector<16x128xf32>,
    %c0_i32_8 = arith.constant 0 : i32
    %9 = arith.cmpi eq, %arg2, %c0_i32_8 : i32
    %10 = arith.extui %9 : i1 to i32
    %c0_i32_9 = arith.constant 0 : i32
    %11 = arith.cmpi ne, %10, %c0_i32_9 : i32
    scf.if %11 {
      %c0_10 = arith.constant 0 : index
      %c0_11 = arith.constant 0 : index
      %12 = vector.load %arg7[%c0_10, %c0_11] : memref<16x128xf32, #tpu.memory_space<vmem>>, vector<16x128xf32>
      %c0_12 = arith.constant 0 : index
      %c0_13 = arith.constant 0 : index
      %13 = vector.load %arg5[%c0_12, %c0_13] : memref<1x128xf32, #tpu.memory_space<vmem>>, vector<1x128xf32>
      %14 = vector.broadcast %13 : vector<1x128xf32> to vector<16x128xf32>
      %15 = arith.addf %12, %14 : vector<16x128xf32>
      %16 = arith.negf %15 : vector<16x128xf32>
      %17 = math.exp %16 : vector<16x128xf32>
      %cst_14 = arith.constant 1.000000e+00 : f32
      %18 = vector.broadcast %cst_14 : f32 to vector<16x128xf32>
      %19 = arith.addf %18, %17 : vector<16x128xf32>
      %20 = arith.divf %18, %19 : vector<16x128xf32>
      %c0_15 = arith.constant 0 : index
      %c0_16 = arith.constant 0 : index
      %21 = vector.load %arg6[%c0_15, %c0_16] : memref<16x128xf32, #tpu.memory_space<vmem>>, vector<16x128xf32>
      tpu.vector_store %arg6[%c0_15, %c0_16], %20 {strides = array<i32>} : memref<16x128xf32, #tpu.memory_space<vmem>>, vector<16x128xf32>,
    } else {
    }
    return
  }
  func.func @transform_0(%arg0: i32, %arg1: i32, %arg2: i32) -> (i32, i32) {
    %c0_i32 = arith.constant 0 : i32
    return %arg0, %arg2 : i32, i32
  }
  func.func @transform_1(%arg0: i32, %arg1: i32, %arg2: i32) -> (i32, i32) {
    %c0_i32 = arith.constant 0 : i32
    return %arg2, %arg1 : i32, i32
  }
  func.func @transform_2(%arg0: i32, %arg1: i32, %arg2: i32) -> (i32, i32) {
    %c0_i32 = arith.constant 0 : i32
    %c0_i32_0 = arith.constant 0 : i32
    return %c0_i32, %arg1 : i32, i32
  }
  func.func @transform_3(%arg0: i32, %arg1: i32, %arg2: i32) -> (i32, i32) {
    %c0_i32 = arith.constant 0 : i32
    return %arg0, %arg1 : i32, i32
  }
}

</mosaic_0001>

<llo_original>
// kernel: forward.1
$region0: #{forward.1}
  #allocation0 [shape = 'u32[]', space=smem, size = 0x4, offset = 0x4, fixed_abs, tag = 'smem constant byte address 0x4 - core index']
  #allocation1 [shape = 'u32[144,128]{1,0:T(1,128)}', space=vmem, size = 0x12000, scoped, tag = 'internal scratch']
  #allocation2 [shape = 'f32[16,128]{1,0:T(8,128)}', space=vmem, size = 0x2000, scoped, tag = 'scratch operand']
  %s0 = inlined_call_operand.vmem [shape: bf16[16,128], index: 0, kind: input, shape index: {}]
  %s1 = inlined_call_operand.hbm [shape: bf16[128,128], index: 1, kind: input, shape index: {}]
  %s2 = inlined_call_operand.vmem [shape: f32[1,128], index: 2, kind: input, shape index: {}]
  %s3 = inlined_call_operand.vmem [shape: f32[16,128], index: 3, kind: output, shape index: {}]
  %s4 = sld [smem:[#allocation0]]
  $region34: #{forward.1} parent=0
    _
  %s6 = ssub.s32 1, %s4
  %s7 = scalar_select 0, %s6, %s4
  $region1: #{forward.1} parent=0
    #allocation3 [shape = 'u8[32768]{0}', space=vmem, size = 0x8000, scoped, tag = 'input window, operand 1, single buffered']
    #allocation4 [shape = 's32[1]{0}', space=sflag, size = 0x4, scoped, tag = 'scoped memory for forward.1']
    %8 = vsyncpa [#allocation4], 0
    // Predicated region
    $region2: #{forward.1} parent=1 // pred_check
      _
    $region3: #{forward.1} parent=1 // pred_check_branch
      %10 = sbr.rel (0) target = $region5
    $region4: #{forward.1} parent=1 // pred_region
      _
    $region5: #{forward.1} parent=1 // pred_fallthru
      _
    // Predicated region
    $region6: #{forward.1} parent=1 // pred_check
      _
    $region7: #{forward.1} parent=1 // pred_check_branch
      %12 = sbr.rel (0) target = $region9
    $region8: #{forward.1} parent=1 // pred_region
      %s14 = ssub.s32 1024, 1024
      %15 = vsyncadd [#allocation4], %s14
      %s16 = sshll.u32 [#allocation3], 4
      %s17 = int_to_ptr.vmem [resolvable:$true] %s16
      %22 = dma.hbm_to_vmem [thread:$0]  %s1, 1024, %s17, [#allocation4], 64, 64, 4
    $region9: #{forward.1} parent=1 // pred_fallthru
      _
    // Predicated region
    $region10: #{forward.1} parent=1 // pred_check
      _
    $region11: #{forward.1} parent=1 // pred_check_branch
      %24 = sbr.rel (0) target = $region13
    $region12: #{forward.1} parent=1 // pred_region
      _
    $region13: #{forward.1} parent=1 // pred_fallthru
      _
    // Predicated region
    $region14: #{forward.1} parent=1 // pred_check
      _
    $region15: #{forward.1} parent=1 // pred_check_branch
      %26 = sbr.rel (0) target = $region17
    $region16: #{forward.1} parent=1 // pred_region
      %27 = dma.done [#allocation4], 1024
    $region17: #{forward.1} parent=1 // pred_fallthru
      _
    %p29 = scmp.eq.s32.totalorder 0, 0
    // Predicated region
    $region18: #{forward.1} parent=1 // pred_check
      %p30 = pneg %p29
    $region19: #{forward.1} parent=1 // pred_check_branch
      %32 = sbr.rel (%p30) target = $region21
    $region20: #{forward.1} parent=1 // pred_region
      %33 = vst [vmem:[#allocation2] sm:$0xff] 0.0
      %34 = vst [vmem:[#allocation2 + $0x8] sm:$0xff] 0.0
    $region21: #{forward.1} parent=1 // pred_fallthru
      _
    %v35 = vld [vmem:[#allocation2] sm:$0xff]
    %v36 = vld [vmem:[#allocation2 + $0x8] sm:$0xff]
    %v37 = vld [vmem:[%s0] sm:$0xf]
    %v38 = vld [vmem:[%s0 + $0x4] sm:$0xf]
    %v39 = vld [vmem:[#allocation3] sm:$0xf]
    %v40 = vld [vmem:[#allocation3 + $0x4] sm:$0xf]
    %v41 = vld [vmem:[#allocation3 + $0x8] sm:$0xf]
    %v42 = vld [vmem:[#allocation3 + $0xc] sm:$0xf]
    %v43 = vld [vmem:[#allocation3 + $0x10] sm:$0xf]
    %v44 = vld [vmem:[#allocation3 + $0x14] sm:$0xf]
    %v45 = vld [vmem:[#allocation3 + $0x18] sm:$0xf]
    %v46 = vld [vmem:[#allocation3 + $0x1c] sm:$0xf]
    %v47 = vld [vmem:[#allocation3 + $0x20] sm:$0xf]
    %v48 = vld [vmem:[#allocation3 + $0x24] sm:$0xf]
    %v49 = vld [vmem:[#allocation3 + $0x28] sm:$0xf]
    %v50 = vld [vmem:[#allocation3 + $0x2c] sm:$0xf]
    %v51 = vld [vmem:[#allocation3 + $0x30] sm:$0xf]
    %v52 = vld [vmem:[#allocation3 + $0x34] sm:$0xf]
    %v53 = vld [vmem:[#allocation3 + $0x38] sm:$0xf]
    %v54 = vld [vmem:[#allocation3 + $0x3c] sm:$0xf]
    %v57 = vunpack.c.l.b16 %v37
    %v58 = vunpack.c.l.b16 %v38
    %v59 = vpack.c.b16 %v58, %v57
    %v77 = vunpack.c.l.b16 %v39
    %v78 = vunpack.c.l.b16 %v40
    %v79 = vunpack.c.l.b16 %v41
    %v80 = vunpack.c.l.b16 %v42
    %v81 = vunpack.c.l.b16 %v43
    %v82 = vunpack.c.l.b16 %v44
    %v83 = vunpack.c.l.b16 %v45
    %v84 = vunpack.c.l.b16 %v46
    %v85 = vunpack.c.l.b16 %v47
    %v86 = vunpack.c.l.b16 %v48
    %v87 = vunpack.c.l.b16 %v49
    %v88 = vunpack.c.l.b16 %v50
    %v89 = vunpack.c.l.b16 %v51
    %v90 = vunpack.c.l.b16 %v52
    %v91 = vunpack.c.l.b16 %v53
    %v92 = vunpack.c.l.b16 %v54
    %v93 = vpack.c.b16 %v78, %v77
    %v94 = vpack.c.b16 %v80, %v79
    %v95 = vpack.c.b16 %v82, %v81
    %v96 = vpack.c.b16 %v84, %v83
    %v97 = vpack.c.b16 %v86, %v85
    %v98 = vpack.c.b16 %v88, %v87
    %v99 = vpack.c.b16 %v90, %v89
    %v100 = vpack.c.b16 %v92, %v91
    %109 = vmatprep.subr.bf16.mxu0 0
    %110 = vmatpush1.bf16.msra.mxu0 %v93
    %111 = vmatprep.subr.bf16.mxu0 0
    %112 = vmatpush1.bf16.msra.mxu0 %v94
    %113 = vmatprep.subr.bf16.mxu0 0
    %114 = vmatpush1.bf16.msra.mxu0 %v95
    %115 = vmatprep.subr.bf16.mxu0 0
    %116 = vmatpush1.bf16.msra.mxu0 %v96
    %117 = vmatprep.subr.bf16.mxu0 0
    %118 = vmatpush1.bf16.msra.mxu0 %v97
    %119 = vmatprep.subr.bf16.mxu0 0
    %120 = vmatpush1.bf16.msra.mxu0 %v98
    %121 = vmatprep.subr.bf16.mxu0 0
    %122 = vmatpush1.bf16.msra.mxu0 %v99
    %123 = vmatprep.subr.bf16.mxu0 0
    %124 = vmatpush1.bf16.msra.mxu0 %v100
    %125 = vmatprep.subr.bf16.mxu0 0
    %126 = vmatpush1.bf16.msra.mxu0 0
    %127 = vmatprep.subr.bf16.mxu0 0
    %128 = vmatpush1.bf16.msra.mxu0 0
    %129 = vmatprep.subr.bf16.mxu0 0
    %130 = vmatpush1.bf16.msra.mxu0 0
    %131 = vmatprep.subr.bf16.mxu0 0
    %132 = vmatpush1.bf16.msra.mxu0 0
    %133 = vmatprep.subr.bf16.mxu0 0
    %134 = vmatpush1.bf16.msra.mxu0 0
    %135 = vmatprep.subr.bf16.mxu0 0
    %136 = vmatpush1.bf16.msra.mxu0 0
    %137 = vmatprep.subr.bf16.mxu0 0
    %138 = vmatpush1.bf16.msra.mxu0 0
    %139 = vmatprep.subr.bf16.mxu0 0
    %140 = vmatpush1.bf16.msra.mxu0 0
    %141 = vmatprep.mubr.bf16.mxu0 0
    %142 = vmatmul.mubr.bf16.gmra.mrb[0].mxu0 %v59
    %v143 = vpop.f32.mrb[0].mxu0
    %v144 = vadd.f32 0.0, %v143
    %v145 = vpop.f32.mrb[0].mxu0
    %v146 = vpop.f32.mrb[0].mxu0
    %v147 = vadd.f32 0.0, %v146
    %v148 = vpop.f32.mrb[0].mxu0
    %149 = vdwg.mxu0
    %v150 = vadd.f32 %v35, %v144
    %v151 = vadd.f32 %v36, %v147
    %152 = vst [vmem:[#allocation2] sm:$0xff] %v150
    %153 = vst [vmem:[#allocation2 + $0x8] sm:$0xff] %v151
    // Predicated region
    $region22: #{forward.1} parent=1 // pred_check
      %p154 = pneg %p29
    $region23: #{forward.1} parent=1 // pred_check_branch
      %156 = sbr.rel (%p154) target = $region25
    $region24: #{forward.1} parent=1 // pred_region
      %v157 = vld [vmem:[#allocation2] sm:$0xff]
      %v158 = vld [vmem:[#allocation2 + $0x8] sm:$0xff]
      %v159 = vld [vmem:[%s2] sm:$0x1]
      %v161 = vlaneseq
      %v162 = vshrl.u32 %v161, 7
      %v163 = vsub.s32 0, %v162
      %v164 = vrot.slane %v159, %v163
      %v166 = vadd.f32 %v157, %v164
      %v167 = vadd.f32 %v158, %v164
      %v168 = vxor.u32 %v166, 2147483648
      %v169 = vxor.u32 %v167, 2147483648
      %v170 = vmul.f32 %v168, 1.442695
      %v171 = vpow.pop %v170
      %v172 = vmul.f32 %v169, 1.442695
      %v173 = vpow.pop %v172
      %v174 = vadd.f32 %v171, 1.0
      %v175 = vadd.f32 %v173, 1.0
      %v176 = vrcp.pop %v174
      %v177 = vmul.f32 1.0, %v176
      %v178 = vrcp.pop %v175
      %v179 = vmul.f32 1.0, %v178
      %180 = vst [vmem:[%s3] sm:$0xff] %v177
      %181 = vst [vmem:[%s3 + $0x8] sm:$0xff] %v179
    $region25: #{forward.1} parent=1 // pred_fallthru
      _
    // Predicated region
    $region26: #{forward.1} parent=1 // pred_check
      _
    $region27: #{forward.1} parent=1 // pred_check_branch
      %183 = sbr.rel (0) target = $region29
    $region28: #{forward.1} parent=1 // pred_region
      _
    $region29: #{forward.1} parent=1 // pred_fallthru
      _
    // Predicated region
    $region30: #{forward.1} parent=1 // pred_check
      _
    $region31: #{forward.1} parent=1 // pred_check_branch
      %185 = sbr.rel (0) target = $region33
    $region32: #{forward.1} parent=1 // pred_region
      _
    $region33: #{forward.1} parent=1 // pred_fallthru
      _
    %186 = vsyncpa [#allocation4], 1

</llo_original>
